<compile_context>
chip_gen: v5e
topology: v5e:2x2
jax: 0.10.0
libtpu: 0.0.40
codegen_flags: <defaults>
</compile_context>

<pallas_src>
import functools

import jax
import jax.numpy as jnp
from jax.experimental import pallas as pl
from jax.experimental.pallas import tpu as pltpu

_EPS = 1e-9
_LANES = 128
_SUBLANES = 8
_MAX_CLASS_TILE = 2048          # class-tile width cap (multiple of 128)


def _round_up(x, m):
    return (x + m - 1) // m * m


def _cdiv(x, m):
    return (x + m - 1) // m


def _hw_block_sizes():
    """(per-input block bytes, vmem_limit_bytes) chosen per TPU generation."""
    vmem_bytes = None
    try:
        vmem_bytes = pltpu.get_tpu_info().vmem_capacity_bytes
    except Exception:
        vmem_bytes = None
    if vmem_bytes is None:
        # Unknown chip: conservative sizing that fits every generation.
        return 4 * 1024 * 1024, 40 * 1024 * 1024
    if vmem_bytes >= 96 * 1024 * 1024:
        # v5e / v6e (128 MiB physical VMEM): 8 MiB blocks, generous limit.
        return 8 * 1024 * 1024, 64 * 1024 * 1024
    # v7x (64 MiB per-core VMEM): 2 inputs x 2 buffers x 8 MiB = 32 MiB + slack.
    return 8 * 1024 * 1024, 44 * 1024 * 1024


def _ce_partial_kernel(x_ref, t_ref, part_ref, *, n, c, tm, tc):
    """Per-(row-tile, class-tile) partial of sum(targets * log(outputs + eps)).

    x_ref, t_ref : (tm, tc) VMEM blocks (may hang past the array; tails masked)
    part_ref     : (1, 1, 128) lane-dense partial for this (i, j) tile
    """
    i = pl.program_id(0)
    j = pl.program_id(1)

    need_row_mask = (n % tm) != 0
    need_col_mask = (c % tc) != 0

    row_mask = None
    if need_row_mask:
        row_ids = i * tm + jax.lax.broadcasted_iota(jnp.int32, (tm, _LANES), 0)
        row_mask = row_ids < n
    lane_ids = None
    if need_col_mask:
        lane_ids = jax.lax.broadcasted_iota(jnp.int32, (tm, _LANES), 1)

    folded = jnp.zeros((tm, _LANES), jnp.float32)
    for s in range(tc // _LANES):
        sl = slice(s * _LANES, (s + 1) * _LANES)
        x = x_ref[:, sl].astype(jnp.float32)     # cast the strip, not the block
        t = t_ref[:, sl].astype(jnp.float32)

        mask = None
        if need_col_mask:
            # remaining valid columns for this strip of this class tile
            mask = lane_ids < (c - s * _LANES - j * tc)
        if need_row_mask:
            mask = row_mask if mask is None else jnp.logical_and(mask, row_mask)
        if mask is not None:
            # Mask x before the log and t before the multiply so out-of-bounds
            # garbage (possibly NaN/Inf bit patterns) never reaches the sum.
            x = jnp.where(mask, x, 1.0)
            t = jnp.where(mask, t, 0.0)

        folded = folded + t * jnp.log(x + _EPS)   # fused strip contribution

    # One cross-sublane reduce per grid step (hidden under the HBM stream).
    part_ref[...] = jnp.sum(folded, axis=0, keepdims=True).reshape(1, 1, _LANES)


def normal_cross_entropy_loss(outputs, targets):
    """Pallas implementation of NormalCrossEntropyLoss.forward."""
    assert outputs.shape == targets.shape and outputs.ndim == 2
    n, c = outputs.shape
    itemsize = jnp.dtype(outputs.dtype).itemsize

    block_bytes, vmem_limit = _hw_block_sizes()

    # ---- tile selection -----------------------------------------------------
    c128 = _round_up(c, _LANES)
    tc = min(c128, _MAX_CLASS_TILE)
    num_col_tiles = _cdiv(c, tc)

    target_elems = block_bytes // itemsize
    tm = max(_SUBLANES, (target_elems // tc) // _SUBLANES * _SUBLANES)
    n8 = _round_up(n, _SUBLANES)
    tm = min(tm, n8)
    # If the whole problem would otherwise be a single grid step, split the
    # batch so v7x's two TensorCores both get work (both axes are "parallel").
    if tm >= n8 and num_col_tiles == 1 and n >= 2 * _SUBLANES:
        tm = min(tm, _round_up(_cdiv(n, 2), _SUBLANES))
    num_row_tiles = _cdiv(n, tm)

    kernel = functools.partial(_ce_partial_kernel, n=n, c=c, tm=tm, tc=tc)

    partials = pl.pallas_call(
        kernel,
        out_shape=jax.ShapeDtypeStruct(
            (num_row_tiles * num_col_tiles, 1, _LANES), jnp.float32),
        grid_spec=pltpu.PrefetchScalarGridSpec(
            num_scalar_prefetch=0,
            grid=(num_row_tiles, num_col_tiles),
            in_specs=[
                pl.BlockSpec((tm, tc), lambda i, j: (i, j)),
                pl.BlockSpec((tm, tc), lambda i, j: (i, j)),
            ],
            # Each (i, j) tile writes its own (1, 1, 128) partial exactly once;
            # last-two block dims equal the full array dims -> clean lowering.
            out_specs=pl.BlockSpec(
                (1, 1, _LANES), lambda i, j: (i * num_col_tiles + j, 0, 0)),
        ),
        compiler_params=pltpu.CompilerParams(
            dimension_semantics=("parallel", "parallel"),
            vmem_limit_bytes=vmem_limit,
        ),
        cost_estimate=pl.CostEstimate(
            flops=3 * n * c,
            transcendentals=n * c,
            bytes_accessed=2 * n * c * itemsize
            + num_row_tiles * num_col_tiles * _LANES * 4,
        ),
    )(outputs, targets)

    # Tiny finishing reduction; mean over the *true* batch size.
    return -jnp.sum(partials) / jnp.float32(n)


def _reference(outputs, targets):
    ce = -jnp.sum(targets.astype(jnp.float32)
                  * jnp.log(outputs.astype(jnp.float32) + _EPS), axis=1)
    return jnp.mean(ce)


if __name__ == "__main__":
    key = jax.random.PRNGKey(0)
    k1, k2 = jax.random.split(key)

    # Small, deliberately unaligned shapes (exercise both row and column masks).
    N, C = 37, 100
    logits = jax.random.normal(k1, (N, C), dtype=jnp.float32)
    outputs = jax.nn.softmax(logits, axis=1)                   # predicted probs
    tgt_idx = jax.random.randint(k2, (N,), 0, C)
    targets = jax.nn.one_hot(tgt_idx, C, dtype=jnp.float32)    # target distribution

    loss = jax.block_until_ready(normal_cross_entropy_loss(outputs, targets))
    ref = jax.block_until_ready(_reference(outputs, targets))
    assert jnp.allclose(loss, ref, rtol=1e-5, atol=1e-5), (loss, ref)

    print("KERNEL_OK")
</pallas_src>

<mosaic_0001>
module attributes {stable_mosaic.version = 11 : i64} {
  func.func @_ce_partial_kernel(%arg0: i32, %arg1: i32, %arg2: memref<24x128xf32, #tpu.memory_space<vmem>>, %arg3: memref<24x128xf32, #tpu.memory_space<vmem>>, %arg4: memref<1x1x128xf32, #tpu.memory_space<vmem>>) attributes {dimension_semantics = [#tpu.dimension_semantics<parallel>, #tpu.dimension_semantics<parallel>], iteration_bounds = array<i64: 2, 1>, scalar_prefetch = 0 : i64, scratch_operands = 0 : i64, tpu.core_type = #tpu.core_type<tc>, window_params = [{transform_indices = @transform_0, window_bounds = array<i64: 24, 128>}, {transform_indices = @transform_1, window_bounds = array<i64: 24, 128>}, {transform_indices = @transform_2, window_bounds = array<i64: 1, 1, 128>}]} {
    %c24_i32 = arith.constant 24 : i32
    %0 = arith.muli %arg0, %c24_i32 : i32
    %1 = tpu.iota {dimensions = array<i32: 0>} : vector<24x128xi32>
    %2 = vector.broadcast %0 : i32 to vector<24x128xi32>
    %3 = arith.addi %2, %1 : vector<24x128xi32>
    %c37_i32 = arith.constant 37 : i32
    %4 = vector.broadcast %c37_i32 : i32 to vector<24x128xi32>
    %5 = arith.cmpi slt, %3, %4 : vector<24x128xi32>
    %6 = tpu.iota {dimensions = array<i32: 1>} : vector<24x128xi32>
    %cst = arith.constant 0.000000e+00 : f32
    %7 = vector.broadcast %cst : f32 to vector<24x128xf32>
    %c0 = arith.constant 0 : index
    %c0_0 = arith.constant 0 : index
    %8 = vector.load %arg2[%c0, %c0_0] : memref<24x128xf32, #tpu.memory_space<vmem>>, vector<24x128xf32>
    %c0_1 = arith.constant 0 : index
    %c0_2 = arith.constant 0 : index
    %9 = vector.load %arg3[%c0_1, %c0_2] : memref<24x128xf32, #tpu.memory_space<vmem>>, vector<24x128xf32>
    %c128_i32 = arith.constant 128 : i32
    %10 = arith.muli %arg1, %c128_i32 : i32
    %c100_i32 = arith.constant 100 : i32
    %11 = arith.subi %c100_i32, %10 : i32
    %12 = vector.broadcast %11 : i32 to vector<24x128xi32>
    %13 = arith.cmpi slt, %6, %12 : vector<24x128xi32>
    %14 = arith.andi %13, %5 : vector<24x128xi1>
    %cst_3 = arith.constant 1.000000e+00 : f32
    %15 = vector.broadcast %cst_3 : f32 to vector<24x128xf32>
    %16 = arith.select %14, %8, %15 : vector<24x128xi1>, vector<24x128xf32>
    %cst_4 = arith.constant 0.000000e+00 : f32
    %17 = vector.broadcast %cst_4 : f32 to vector<24x128xf32>
    %18 = arith.select %14, %9, %17 : vector<24x128xi1>, vector<24x128xf32>
    %cst_5 = arith.constant 9.99999971E-10 : f32
    %19 = vector.broadcast %cst_5 : f32 to vector<24x128xf32>
    %20 = arith.addf %16, %19 : vector<24x128xf32>
    %21 = math.log %20 : vector<24x128xf32>
    %22 = arith.mulf %18, %21 : vector<24x128xf32>
    %23 = arith.addf %7, %22 : vector<24x128xf32>
    %cst_6 = arith.constant dense<0.000000e+00> : vector<128xf32>
    %24 = vector.multi_reduction <add>, %23, %cst_6 [0] : vector<24x128xf32> to vector<128xf32>
    %25 = vector.shape_cast %24 : vector<128xf32> to vector<1x128xf32>
    %26 = vector.shape_cast %25 : vector<1x128xf32> to vector<1x1x128xf32>
    %c0_7 = arith.constant 0 : index
    %c0_8 = arith.constant 0 : index
    %c0_9 = arith.constant 0 : index
    %27 = vector.load %arg4[%c0_7, %c0_8, %c0_9] : memref<1x1x128xf32, #tpu.memory_space<vmem>>, vector<1x1x128xf32>
    tpu.vector_store %arg4[%c0_7, %c0_8, %c0_9], %26 {strides = array<i32>} : memref<1x1x128xf32, #tpu.memory_space<vmem>>, vector<1x1x128xf32>,
    return
  }
  func.func @transform_0(%arg0: i32, %arg1: i32) -> (i32, i32) {
    %c0_i32 = arith.constant 0 : i32
    return %arg0, %arg1 : i32, i32
  }
  func.func @transform_1(%arg0: i32, %arg1: i32) -> (i32, i32) {
    %c0_i32 = arith.constant 0 : i32
    return %arg0, %arg1 : i32, i32
  }
  func.func @transform_2(%arg0: i32, %arg1: i32) -> (i32, i32, i32) {
    %c1_i32 = arith.constant 1 : i32
    %0 = arith.muli %arg0, %c1_i32 : i32
    %1 = arith.addi %0, %arg1 : i32
    %c0_i32 = arith.constant 0 : i32
    %c0_i32_0 = arith.constant 0 : i32
    %c0_i32_1 = arith.constant 0 : i32
    return %1, %c0_i32, %c0_i32_0 : i32, i32, i32
  }
}

</mosaic_0001>

<llo_original>
// kernel: tpu_custom_call.1
$region0: #{tpu_custom_call.1}
  #allocation0 [shape = 'u32[]', space=smem, size = 0x4, offset = 0x4, fixed_abs, tag = 'smem constant byte address 0x4 - core index']
  #allocation1 [shape = 'u32[72,128]{1,0:T(1,128)}', space=vmem, size = 0x9000, scoped, tag = 'internal scratch']
  %s0 = inlined_call_operand.hbm [shape: f32[37,100], index: 0, kind: input, shape index: {}]
  %s1 = inlined_call_operand.hbm [shape: f32[37,100], index: 1, kind: input, shape index: {}]
  %s2 = inlined_call_operand.hbm [shape: f32[2,1,128], index: 2, kind: output, shape index: {}]
  %s3 = sld [smem:[#allocation0]]
  $region49: #{tpu_custom_call.1} parent=0
    _
  %s5 = ssub.s32 1, %s3
  %s6 = scalar_select 0, %s5, %s3
  $region1: #{tpu_custom_call.1} parent=0
    #allocation2 [shape = 'u8[24576]{0}', space=vmem, size = 0x6000, scoped, tag = 'input window, operand 0']
    #allocation3 [shape = 's32[2]{0}', space=sflag, size = 0x8, scoped, tag = 'scoped memory for tpu_custom_call.1']
    #allocation4 [shape = 's32[2]{0}', space=sflag, size = 0x8, scoped, tag = 'scoped memory for tpu_custom_call.1']
    #allocation5 [shape = 'u8[24576]{0}', space=vmem, size = 0x6000, scoped, tag = 'input window, operand 1']
    #allocation6 [shape = 's32[2]{0}', space=sflag, size = 0x8, scoped, tag = 'scoped memory for tpu_custom_call.1']
    #allocation7 [shape = 'u8[1024]{0}', space=vmem, size = 0x400, scoped, tag = 'output window, operand 0']
    %7 = vsyncpa [#allocation3], 0
    %s8 = scalar_lea.sflag [#allocation3], 1
    %9 = vsyncpa %s8, 0
    %10 = vsyncpa [#allocation6], 0
    %s11 = scalar_lea.sflag [#allocation6], 1
    %12 = vsyncpa %s11, 0
    %13 = vsyncpa [#allocation4], 0
    %s14 = scalar_lea.sflag [#allocation4], 1
    %15 = vsyncpa %s14, 0
    loop: start=0, step=1, limit=4
    $region2: #{tpu_custom_call.1} parent=1 // loop_pre_header
      _
    $region3: #{tpu_custom_call.1} parent=1 // loop_header
      %s17 = sphi 0, %s21
      %p18 = scmp.ge.s32.totalorder %s17, 4
      %s24 = sphi 0, %s36
      %s25 = sphi 0, %s32
      %s26 = sphi 0, %s24
      %s27 = sphi 0, %s25
      %s28 = sphi 0, %s26
      %s29 = sphi 0, %s27
      %s41 = sphi 0, %s43
      %s44 = sphi 0, %s41
      %s45 = sphi 0, %s44
      %s61 = sphi 0, %s45
      %s69 = sphi 0, %s71
      %s72 = sphi 0, %s69
      %s73 = sphi 0, %s72
      %s89 = sphi 0, %s73
      %s97 = sphi 0, %s99
      %s100 = sphi 0, %s97
      %s101 = sphi 0, %s100
      %s117 = sphi 0, %s101
    $region4: #{tpu_custom_call.1} parent=1 // loop_header_branch
      %20 = sbr.rel (%p18) target = $region8
    $region5: #{tpu_custom_call.1} parent=1 // loop_body
      %s22 = ssub.s32 %s17, 1
      %s23 = ssub.s32 %s17, 2
      %s30 = sadd.s32 1, %s25
      %p31 = scmp.ge.s32.totalorder %s30, 1
      %s32 = scalar_select %p31, 0, %s30
      %s33 = sadd.s32 1, %s24
      %s34 = scalar_select %p31, %s33, %s24
      %p35 = scmp.ge.s32.totalorder %s34, 2
      %s36 = scalar_select %p35, 0, %s34
      %s37 = ssub.s32 %s24, %s36
      %s38 = ssub.s32 %s25, %s32
      %s39 = sor.u32 %s37, %s38
      %p40 = scmp.eq.s32.totalorder %s39, 0
      %s42 = sadd.s32 %s41, 1
      %s43 = scalar_select %p40, %s41, %s42
      %p46 = pneg %p40
      %p47 = scmp.eq.s32.totalorder %s17, 1
      %p48 = por %p46, %p47
      %p49 = scmp.ne.s32.totalorder %s41, %s44
      %p50 = scmp.eq.s32.totalorder %s17, 0
      %p51 = por %p49, %p50
      %p52 = scmp.ne.s32.totalorder %s41, %s44
      %p53 = scmp.eq.s32.totalorder %s22, 1
      %p54 = por %p52, %p53
      %p55 = scmp.ne.s32.totalorder %s44, %s45
      %p56 = scmp.eq.s32.totalorder %s22, 0
      %p57 = por %p55, %p56
      %p58 = scmp.ne.s32.totalorder %s44, %s45
      %p59 = scmp.eq.s32.totalorder %s23, 1
      %p60 = por %p58, %p59
      %p62 = scmp.ne.s32.totalorder %s45, %s61
      %p63 = scmp.eq.s32.totalorder %s23, 0
      %p64 = por %p62, %p63
      %s65 = ssub.s32 %s24, %s36
      %s66 = ssub.s32 %s25, %s32
      %s67 = sor.u32 %s65, %s66
      %p68 = scmp.eq.s32.totalorder %s67, 0
      %s70 = sadd.s32 %s69, 1
      %s71 = scalar_select %p68, %s69, %s70
      %p74 = pneg %p68
      %p75 = scmp.eq.s32.totalorder %s17, 1
      %p76 = por %p74, %p75
      %p77 = scmp.ne.s32.totalorder %s69, %s72
      %p78 = scmp.eq.s32.totalorder %s17, 0
      %p79 = por %p77, %p78
      %p80 = scmp.ne.s32.totalorder %s69, %s72
      %p81 = scmp.eq.s32.totalorder %s22, 1
      %p82 = por %p80, %p81
      %p83 = scmp.ne.s32.totalorder %s72, %s73
      %p84 = scmp.eq.s32.totalorder %s22, 0
      %p85 = por %p83, %p84
      %p86 = scmp.ne.s32.totalorder %s72, %s73
      %p87 = scmp.eq.s32.totalorder %s23, 1
      %p88 = por %p86, %p87
      %p90 = scmp.ne.s32.totalorder %s73, %s89
      %p91 = scmp.eq.s32.totalorder %s23, 0
      %p92 = por %p90, %p91
      %s93 = sadd.s32 %s24, %s25
      %s94 = sadd.s32 %s36, %s32
      %s95 = ssub.s32 %s93, %s94
      %p96 = scmp.eq.s32.totalorder %s95, 0
      %s98 = sadd.s32 %s97, 1
      %s99 = scalar_select %p96, %s97, %s98
      %p102 = pneg %p96
      %p103 = scmp.eq.s32.totalorder %s17, 1
      %p104 = por %p102, %p103
      %p105 = scmp.ne.s32.totalorder %s97, %s100
      %p106 = scmp.eq.s32.totalorder %s17, 0
      %p107 = por %p105, %p106
      %p108 = scmp.ne.s32.totalorder %s97, %s100
      %p109 = scmp.eq.s32.totalorder %s22, 1
      %p110 = por %p108, %p109
      %p111 = scmp.ne.s32.totalorder %s100, %s101
      %p112 = scmp.eq.s32.totalorder %s22, 0
      %p113 = por %p111, %p112
      %p114 = scmp.ne.s32.totalorder %s100, %s101
      %p115 = scmp.eq.s32.totalorder %s23, 1
      %p116 = por %p114, %p115
      %p118 = scmp.ne.s32.totalorder %s101, %s117
      %p119 = scmp.eq.s32.totalorder %s23, 0
      %p120 = por %p118, %p119
      %p121 = scmp.le.s32.totalorder 1, %s17
      %p122 = scmp.lt.s32.totalorder %s17, 3
      %p123 = pnand %p121, %p122
      %p124 = pneg %p123
      // Predicated region
      $region9: #{tpu_custom_call.1} parent=5 // pred_check
        _
      $region10: #{tpu_custom_call.1} parent=5 // pred_check_branch
        %126 = sbr.rel (%p123) target = $region12
      $region11: #{tpu_custom_call.1} parent=5 // pred_region
        %s127 = ssub.s32 %s17, 1
      $region12: #{tpu_custom_call.1} parent=5 // pred_fallthru
        _
      %p128 = scmp.lt.s32.totalorder %s17, 2
      // Predicated region
      $region13: #{tpu_custom_call.1} parent=5 // pred_check
        %p129 = pneg %p128
      $region14: #{tpu_custom_call.1} parent=5 // pred_check_branch
        %131 = sbr.rel (%p129) target = $region16
      $region15: #{tpu_custom_call.1} parent=5 // pred_region
        // Predicated region
        $region17: #{tpu_custom_call.1} parent=15 // pred_check
          %p132 = pneg %p51
        $region18: #{tpu_custom_call.1} parent=15 // pred_check_branch
          %134 = sbr.rel (%p132) target = $region20
        $region19: #{tpu_custom_call.1} parent=15 // pred_region
          %s135 = sand.u32 %s41, 1
          %s136 = scalar_lea.sflag [#allocation3], %s135
          %s137 = sand.u32 %s41, 1
          %s138 = smul.addr %s137, 24
          %s139 = scalar_lea.vmem [#allocation2], %s138
          %s140 = smul.u32 3, %s24
          %s141 = ssub.s32 5, %s140
          %p142 = scmp.lt.s32.totalorder %s141, 3
          %s143 = scalar_select %p142, %s141, 3
          %s144 = smul.u32 8, %s143
          %s145 = ssub.s32 24, %s144
          %s146 = sshll.u32 %s145, 4
          %147 = vsyncadd %s136, %s146
          %p148 = scmp.ne.s32.totalorder 0, %s144
          %s149 = sadd.s32 %s25, %s140
          %s150 = smul.addr %s149, 8
          %s151 = scalar_lea.hbm %s0, %s150
          %s152 = smul.u32 8, %s143
          %s153 = sshll.u32 %s151, 4
          %s154 = int_to_ptr.hbm [resolvable:$true] %s153
          %s155 = sshll.u32 %s139, 4
          %s156 = int_to_ptr.vmem [resolvable:$true] %s155
          %s157 = sshll.u32 %s152, 4
          %161 = dma.hbm_to_vmem [thread:$0]  (%p148), %s154, %s157, %s156, %s136, 128, 128, 8
        $region20: #{tpu_custom_call.1} parent=15 // pred_fallthru
          _
        // Predicated region
        $region21: #{tpu_custom_call.1} parent=15 // pred_check
          %p162 = pneg %p79
        $region22: #{tpu_custom_call.1} parent=15 // pred_check_branch
          %164 = sbr.rel (%p162) target = $region24
        $region23: #{tpu_custom_call.1} parent=15 // pred_region
          %s165 = sand.u32 %s69, 1
          %s166 = scalar_lea.sflag [#allocation6], %s165
          %s167 = sand.u32 %s69, 1
          %s168 = smul.addr %s167, 24
          %s169 = scalar_lea.vmem [#allocation5], %s168
          %s170 = smul.u32 3, %s24
          %s171 = ssub.s32 5, %s170
          %p172 = scmp.lt.s32.totalorder %s171, 3
          %s173 = scalar_select %p172, %s171, 3
          %s174 = smul.u32 8, %s173
          %s175 = ssub.s32 24, %s174
          %s176 = sshll.u32 %s175, 4
          %177 = vsyncadd %s166, %s176
          %p178 = scmp.ne.s32.totalorder 0, %s174
          %s179 = sadd.s32 %s25, %s170
          %s180 = smul.addr %s179, 8
          %s181 = scalar_lea.hbm %s1, %s180
          %s182 = smul.u32 8, %s173
          %s183 = sshll.u32 %s181, 4
          %s184 = int_to_ptr.hbm [resolvable:$true] %s183
          %s185 = sshll.u32 %s169, 4
          %s186 = int_to_ptr.vmem [resolvable:$true] %s185
          %s187 = sshll.u32 %s182, 4
          %191 = dma.hbm_to_vmem [thread:$0]  (%p178), %s184, %s187, %s186, %s166, 128, 128, 8
        $region24: #{tpu_custom_call.1} parent=15 // pred_fallthru
          _
      $region16: #{tpu_custom_call.1} parent=5 // pred_fallthru
        _
      %p192 = scmp.le.s32.totalorder 1, %s17
      %p193 = scmp.lt.s32.totalorder %s17, 3
      %p194 = pnand %p192, %p193
      %p195 = pneg %p194
      // Predicated region
      $region25: #{tpu_custom_call.1} parent=5 // pred_check
        _
      $region26: #{tpu_custom_call.1} parent=5 // pred_check_branch
        %197 = sbr.rel (%p194) target = $region28
      $region27: #{tpu_custom_call.1} parent=5 // pred_region
        %s198 = ssub.s32 %s17, 1
        %s199 = sand.u32 %s44, 1
        %s200 = scalar_lea.sflag [#allocation3], %s199
        %s201 = sand.u32 %s44, 1
        %s202 = smul.addr %s201, 24
        %s203 = scalar_lea.vmem [#allocation2], %s202
        // Predicated region
        $region29: #{tpu_custom_call.1} parent=27 // pred_check
          %p204 = pneg %p57
        $region30: #{tpu_custom_call.1} parent=27 // pred_check_branch
          %206 = sbr.rel (%p204) target = $region32
        $region31: #{tpu_custom_call.1} parent=27 // pred_region
          %208 = dma.done %s200, 384
        $region32: #{tpu_custom_call.1} parent=27 // pred_fallthru
          _
        %s209 = sand.u32 %s72, 1
        %s210 = scalar_lea.sflag [#allocation6], %s209
        %s211 = sand.u32 %s72, 1
        %s212 = smul.addr %s211, 24
        %s213 = scalar_lea.vmem [#allocation5], %s212
        // Predicated region
        $region33: #{tpu_custom_call.1} parent=27 // pred_check
          %p214 = pneg %p85
        $region34: #{tpu_custom_call.1} parent=27 // pred_check_branch
          %216 = sbr.rel (%p214) target = $region36
        $region35: #{tpu_custom_call.1} parent=27 // pred_region
          %218 = dma.done %s210, 384
        $region36: #{tpu_custom_call.1} parent=27 // pred_fallthru
          _
        %s219 = sand.u32 %s44, 1
        %s220 = scalar_lea.sflag [#allocation3], %s219
        %s221 = sand.u32 %s44, 1
        %s222 = smul.addr %s221, 24
        %s223 = scalar_lea.vmem [#allocation2], %s222
        %p224 = pneg %p57
        %p225 = pneg %p54
        %s226 = sand.u32 %s72, 1
        %s227 = scalar_lea.sflag [#allocation6], %s226
        %s228 = sand.u32 %s72, 1
        %s229 = smul.addr %s228, 24
        %s230 = scalar_lea.vmem [#allocation5], %s229
        %p231 = pneg %p85
        %p232 = pneg %p82
        %p233 = pneg %p113
        %p234 = pneg %p110
        %s235 = sand.u32 %s100, 1
        %s236 = scalar_lea.sflag [#allocation4], %s235
        %s237 = sand.u32 %s100, 1
        %s238 = scalar_lea.vmem [#allocation7], %s237
        %s239 = smul.u32 3, %s26
        %s240 = ssub.s32 5, %s239
        %p241 = scmp.lt.s32.totalorder %s240, 3
        %s242 = scalar_select %p241, %s240, 3
        %s243 = smul.u32 8, %s242
        %s244 = smul.u32 3, %s26
        %s245 = ssub.s32 5, %s244
        %p246 = scmp.lt.s32.totalorder %s245, 3
        %s247 = scalar_select %p246, %s245, 3
        %s248 = smul.u32 8, %s247
        %s249 = sadd.s32 %s26, %s27
        %s250 = smul.u32 %s26, 24
        %v251 = vlaneseq
        %v252 = vshrl.u32 %v251, 7
        %v253 = vadd.s32 %v252, 8
        %v254 = vadd.s32 %v252, 16
        %v255 = vstv %s250
        %v256 = vadd.s32 %v255, %v252
        %v257 = vadd.s32 %v255, %v253
        %v258 = vadd.s32 %v255, %v254
        %vm259 = vcmp.lt.s32.totalorder %v256, 37
        %vm260 = vcmp.lt.s32.totalorder %v257, 37
        %vm261 = vcmp.lt.s32.totalorder %v258, 37
        %v262 = vlaneseq
        %v263 = vand.u32 %v262, 127
        %v264 = vld [vmem:[%s203] sm:$0xff]
        %v265 = vld [vmem:[%s203 + $0x8] sm:$0xff]
        %v266 = vld [vmem:[%s203 + $0x10] sm:$0xff]
        %v267 = vld [vmem:[%s213] sm:$0xff]
        %v268 = vld [vmem:[%s213 + $0x8] sm:$0xff]
        %v269 = vld [vmem:[%s213 + $0x10] sm:$0xff]
        %s270 = smul.u32 %s27, 128
        %s271 = ssub.s32 100, %s270
        %v272 = vstv %s271
        %vm273 = vcmp.lt.s32.totalorder %v263, %v272
        %vm274 = vmand %vm273, %vm259
        %vm275 = vmand %vm273, %vm260
        %vm276 = vmand %vm273, %vm261
        %v277 = vsel %vm274, %v264, 1.0
        %v278 = vsel %vm275, %v265, 1.0
        %v279 = vsel %vm276, %v266, 1.0
        %v280 = vsel %vm274, %v267, 0.0
        %v281 = vsel %vm275, %v268, 0.0
        %v282 = vsel %vm276, %v269, 0.0
        %v283 = vadd.f32 %v277, 1e-09
        %v284 = vadd.f32 %v278, 1e-09
        %v285 = vadd.f32 %v279, 1e-09
        %v286 = vlog2.pop %v283
        %v287 = vmul.f32 %v286, 0.6931472
        %v288 = vlog2.pop %v284
        %v289 = vmul.f32 %v288, 0.6931472
        %v290 = vlog2.pop %v285
        %v291 = vmul.f32 %v290, 0.6931472
        %v292 = vmul.f32 %v280, %v287
        %v293 = vmul.f32 %v281, %v289
        %v294 = vmul.f32 %v282, %v291
        %v295 = vadd.f32 %v292, 0.0
        %v296 = vadd.f32 %v293, 0.0
        %v297 = vadd.f32 %v294, 0.0
        %v298 = vadd.f32 %v295, %v296
        %v299 = vadd.f32 %v298, %v297
        %v300 = vrot.slane %v299, 4
        %v301 = vadd.f32 %v299, %v300
        %v302 = vrot.slane %v301, 2
        %v303 = vadd.f32 %v301, %v302
        %v304 = vrot.slane %v303, 1
        %v305 = vadd.f32 %v303, %v304
        %306 = vst [vmem:[%s238] sm:$0x1] %v305
        %s307 = sand.u32 %s100, 1
        %s308 = scalar_lea.sflag [#allocation4], %s307
        %s309 = sand.u32 %s100, 1
        %s310 = scalar_lea.vmem [#allocation7], %s309
        // Predicated region
        $region37: #{tpu_custom_call.1} parent=27 // pred_check
          %p311 = pneg %p110
        $region38: #{tpu_custom_call.1} parent=27 // pred_check_branch
          %313 = sbr.rel (%p311) target = $region40
        $region39: #{tpu_custom_call.1} parent=27 // pred_region
          %s314 = sadd.s32 %s26, %s27
          %316 = vsyncadd %s308, 0
          %s317 = scalar_lea.hbm %s2, %s314
          %s319 = sshll.u32 %s310, 4
          %s320 = int_to_ptr.vmem [resolvable:$true] %s319
          %s321 = sshll.u32 %s317, 4
          %s322 = int_to_ptr.hbm [resolvable:$true] %s321
          %324 = dma.vmem_to_hbm [thread:$0]  %s320, 16, %s322, %s308
        $region40: #{tpu_custom_call.1} parent=27 // pred_fallthru
          _
      $region28: #{tpu_custom_call.1} parent=5 // pred_fallthru
        _
      %p325 = scmp.le.s32.totalorder 2, %s17
      // Predicated region
      $region41: #{tpu_custom_call.1} parent=5 // pred_check
        %p326 = pneg %p325
      $region42: #{tpu_custom_call.1} parent=5 // pred_check_branch
        %328 = sbr.rel (%p326) target = $region44
      $region43: #{tpu_custom_call.1} parent=5 // pred_region
        %s329 = ssub.s32 %s17, 2
        // Predicated region
        $region45: #{tpu_custom_call.1} parent=43 // pred_check
          %p330 = pneg %p116
        $region46: #{tpu_custom_call.1} parent=43 // pred_check_branch
          %332 = sbr.rel (%p330) target = $region48
        $region47: #{tpu_custom_call.1} parent=43 // pred_region
          %s333 = sand.u32 %s101, 1
          %s334 = scalar_lea.sflag [#allocation4], %s333
          %s335 = sand.u32 %s101, 1
          %s336 = scalar_lea.vmem [#allocation7], %s335
          %338 = dma.done %s334, 16
        $region48: #{tpu_custom_call.1} parent=43 // pred_fallthru
          _
      $region44: #{tpu_custom_call.1} parent=5 // pred_fallthru
        _
    $region6: #{tpu_custom_call.1} parent=1 // loop_footer
      %s21 = sadd.s32 1, %s17
    $region7: #{tpu_custom_call.1} parent=1 // loop_footer_branch
      %16 = sbr.rel target = $region3
    $region8: #{tpu_custom_call.1} parent=1 // loop_exit
      _
    %339 = vsyncpa [#allocation3], 1
    %s340 = scalar_lea.sflag [#allocation3], 1
    %341 = vsyncpa %s340, 1
    %342 = vsyncpa [#allocation6], 1
    %s343 = scalar_lea.sflag [#allocation6], 1
    %344 = vsyncpa %s343, 1
    %345 = vsyncpa [#allocation4], 1
    %s346 = scalar_lea.sflag [#allocation4], 1
    %347 = vsyncpa %s346, 1

</llo_original>
